<compile_context>
chip_gen: v5e
topology: v5e:2x2
jax: 0.10.0
libtpu: 0.0.40
codegen_flags: <defaults>
</compile_context>

<pallas_src>
import jax
import jax.numpy as jnp
from jax.experimental import pallas as pl
from jax.experimental.pallas import tpu as pltpu


def _model_kernel(x1_ref, x2_ref, out_ref):
    # Blocks: x1/x2 are (bb, N, N), out is (bb, 4N, N).
    n = x1_ref.shape[-1]
    x1 = x1_ref[...]
    x2 = x2_ref[...]

    # Two plain batched dots on the MXU (no lane-concat / offset-slice work).
    a = jnp.einsum("bij,bjk->bik", x1, x2, preferred_element_type=jnp.float32)
    b = jnp.einsum("bij,bjk->bik", x2, x1, preferred_element_type=jnp.float32)

    a = a.astype(out_ref.dtype)
    b = b.astype(out_ref.dtype)

    # cat([a, b, a, a], axis=0) per problem via 4 row-range stores.
    out_ref[:, 0 * n:1 * n, :] = a
    out_ref[:, 1 * n:2 * n, :] = b
    out_ref[:, 2 * n:3 * n, :] = a
    out_ref[:, 3 * n:4 * n, :] = a


def _pick_batch_block(batch, max_block=32):
    """Largest divisor of `batch` that is <= max_block (keeps steps big)."""
    bb = min(batch, max_block)
    while batch % bb != 0:
        bb -= 1
    return bb


def model_forward_batched(x1, x2):
    """x1, x2: (B, N, N) float32 -> (B, 4N, N)."""
    B, n, m = x1.shape
    assert x1.shape == (B, n, m) and x2.shape == (B, m, n) and n == m, (
        "consistent interpretation requires square inputs of matching size")

    bb = _pick_batch_block(B)
    grid = (B // bb,)
    itemsize = jnp.dtype(jnp.float32).itemsize
    cost = pl.CostEstimate(
        flops=4 * B * n ** 3,                       # two N^3 matmuls per pair
        transcendentals=0,
        bytes_accessed=B * (2 * n * n + 4 * n * n) * itemsize,
    )

    return pl.pallas_call(
        _model_kernel,
        out_shape=jax.ShapeDtypeStruct((B, 4 * n, n), jnp.float32),
        grid=grid,
        in_specs=[
            pl.BlockSpec((bb, n, n), lambda i: (i, 0, 0)),
            pl.BlockSpec((bb, n, n), lambda i: (i, 0, 0)),
        ],
        out_specs=pl.BlockSpec((bb, 4 * n, n), lambda i: (i, 0, 0)),
        compiler_params=pltpu.CompilerParams(
            dimension_semantics=("parallel",)),
        cost_estimate=cost,
    )(x1, x2)


def model_forward(x1, x2):
    """Original (unbatched) module signature: x1, x2 (N, N) -> (4N, N)."""
    return model_forward_batched(x1[None], x2[None])[0]


if __name__ == "__main__":
    N = 8
    B = 4
    key = jax.random.PRNGKey(0)
    k1, k2 = jax.random.split(key)
    x1 = jax.random.normal(k1, (B, N, N), dtype=jnp.float32)
    x2 = jax.random.normal(k2, (B, N, N), dtype=jnp.float32)

    # Batched path (entire batch handled in a single large grid step here).
    out = model_forward_batched(x1, x2)
    jax.block_until_ready(out)

    # Pure-JAX reference of the same (consistent) semantics.
    a = jnp.einsum("bij,bjk->bik", x1, x2)
    b = jnp.einsum("bij,bjk->bik", x2, x1)
    ref = jnp.concatenate([a, b, a, a], axis=1)        # (B, 4N, N)
    assert out.shape == (B, 4 * N, N)
    assert jnp.allclose(out, ref, atol=1e-5, rtol=1e-5)

    # Unbatched path matching the original module's forward signature.
    single = model_forward(x1[0], x2[0])
    jax.block_until_ready(single)
    assert single.shape == (4 * N, N)
    assert jnp.allclose(single, ref[0], atol=1e-5, rtol=1e-5)

    print("KERNEL_OK")
</pallas_src>

<mosaic_0001>
module attributes {stable_mosaic.version = 11 : i64} {
  func.func @_model_kernel(%arg0: i32, %arg1: memref<4x8x8xf32, #tpu.memory_space<vmem>>, %arg2: memref<4x8x8xf32, #tpu.memory_space<vmem>>, %arg3: memref<4x32x8xf32, #tpu.memory_space<vmem>>) attributes {dimension_semantics = [#tpu.dimension_semantics<parallel>], iteration_bounds = array<i64: 1>, scalar_prefetch = 0 : i64, scratch_operands = 0 : i64, tpu.core_type = #tpu.core_type<tc>, window_params = [{transform_indices = @transform_0, window_bounds = array<i64: 4, 8, 8>}, {transform_indices = @transform_1, window_bounds = array<i64: 4, 8, 8>}, {transform_indices = @transform_2, window_bounds = array<i64: 4, 32, 8>}]} {
    %c0 = arith.constant 0 : index
    %c0_0 = arith.constant 0 : index
    %c0_1 = arith.constant 0 : index
    %0 = vector.load %arg1[%c0, %c0_0, %c0_1] : memref<4x8x8xf32, #tpu.memory_space<vmem>>, vector<4x8x8xf32>
    %c0_2 = arith.constant 0 : index
    %c0_3 = arith.constant 0 : index
    %c0_4 = arith.constant 0 : index
    %1 = vector.load %arg2[%c0_2, %c0_3, %c0_4] : memref<4x8x8xf32, #tpu.memory_space<vmem>>, vector<4x8x8xf32>
    "tpu.trace_start"() <{level = 10 : i32, message = "bij,bjk->bik"}> : () -> ()
    %cst = arith.constant dense<0.000000e+00> : vector<4x8x8xf32>
    %2 = tpu.matmul %0, %1, %cst {dimension_numbers = #tpu.dot_dimension_numbers<[2], [1], [1], [2], [0, 0, 0, 1, 1, 2], [0], [0]>} : vector<4x8x8xf32>, vector<4x8x8xf32>, vector<4x8x8xf32> -> vector<4x8x8xf32>
    %cst_5 = arith.constant dense<0.000000e+00> : vector<4x8x8xf32>
    %3 = tpu.matmul %1, %0, %cst_5 {dimension_numbers = #tpu.dot_dimension_numbers<[2], [1], [1], [2], [0, 0, 0, 1, 1, 2], [0], [0]>} : vector<4x8x8xf32>, vector<4x8x8xf32>, vector<4x8x8xf32> -> vector<4x8x8xf32>
    "tpu.trace_stop"() : () -> ()
    %c0_6 = arith.constant 0 : index
    %c0_7 = arith.constant 0 : index
    %c0_8 = arith.constant 0 : index
    %4 = vector.load %arg3[%c0_6, %c0_7, %c0_8] : memref<4x32x8xf32, #tpu.memory_space<vmem>>, vector<4x8x8xf32>
    tpu.vector_store %arg3[%c0_6, %c0_7, %c0_8], %2 {strides = array<i32>} : memref<4x32x8xf32, #tpu.memory_space<vmem>>, vector<4x8x8xf32>,
    %c0_9 = arith.constant 0 : index
    %c8 = arith.constant 8 : index
    %c0_10 = arith.constant 0 : index
    %5 = vector.load %arg3[%c0_9, %c8, %c0_10] : memref<4x32x8xf32, #tpu.memory_space<vmem>>, vector<4x8x8xf32>
    tpu.vector_store %arg3[%c0_9, %c8, %c0_10], %3 {strides = array<i32>} : memref<4x32x8xf32, #tpu.memory_space<vmem>>, vector<4x8x8xf32>,
    %c0_11 = arith.constant 0 : index
    %c16 = arith.constant 16 : index
    %c0_12 = arith.constant 0 : index
    %6 = vector.load %arg3[%c0_11, %c16, %c0_12] : memref<4x32x8xf32, #tpu.memory_space<vmem>>, vector<4x8x8xf32>
    tpu.vector_store %arg3[%c0_11, %c16, %c0_12], %2 {strides = array<i32>} : memref<4x32x8xf32, #tpu.memory_space<vmem>>, vector<4x8x8xf32>,
    %c0_13 = arith.constant 0 : index
    %c24 = arith.constant 24 : index
    %c0_14 = arith.constant 0 : index
    %7 = vector.load %arg3[%c0_13, %c24, %c0_14] : memref<4x32x8xf32, #tpu.memory_space<vmem>>, vector<4x8x8xf32>
    tpu.vector_store %arg3[%c0_13, %c24, %c0_14], %2 {strides = array<i32>} : memref<4x32x8xf32, #tpu.memory_space<vmem>>, vector<4x8x8xf32>,
    return
  }
  func.func @transform_0(%arg0: i32) -> (i32, i32, i32) {
    %c0_i32 = arith.constant 0 : i32
    %c0_i32_0 = arith.constant 0 : i32
    %c0_i32_1 = arith.constant 0 : i32
    return %arg0, %c0_i32, %c0_i32_0 : i32, i32, i32
  }
  func.func @transform_1(%arg0: i32) -> (i32, i32, i32) {
    %c0_i32 = arith.constant 0 : i32
    %c0_i32_0 = arith.constant 0 : i32
    %c0_i32_1 = arith.constant 0 : i32
    return %arg0, %c0_i32, %c0_i32_0 : i32, i32, i32
  }
  func.func @transform_2(%arg0: i32) -> (i32, i32, i32) {
    %c0_i32 = arith.constant 0 : i32
    %c0_i32_0 = arith.constant 0 : i32
    %c0_i32_1 = arith.constant 0 : i32
    return %arg0, %c0_i32, %c0_i32_0 : i32, i32, i32
  }
}

</mosaic_0001>

<llo_original>
// kernel: tpu_custom_call.1
$region0: #{tpu_custom_call.1}
  #allocation0 [shape = 'u32[]', space=smem, size = 0x4, offset = 0x4, fixed_abs, tag = 'smem constant byte address 0x4 - core index']
  #allocation1 [shape = 'u32[72,128]{1,0:T(1,128)}', space=vmem, size = 0x9000, scoped, tag = 'internal scratch']
  %s0 = inlined_call_operand.hbm [shape: f32[4,8,8], index: 0, kind: input, shape index: {}]
  %s1 = inlined_call_operand.hbm [shape: f32[4,8,8], index: 1, kind: input, shape index: {}]
  %s2 = inlined_call_operand.vmem [shape: f32[4,32,8], index: 2, kind: output, shape index: {}]
  %s3 = sld [smem:[#allocation0]]
  $region26: #{tpu_custom_call.1} parent=0
    _
  %s5 = ssub.s32 1, %s3
  %s6 = scalar_select 0, %s5, %s3
  $region1: #{tpu_custom_call.1} parent=0
    #allocation2 [shape = 'u8[16384]{0}', space=vmem, size = 0x4000, scoped, tag = 'input window, operand 0, single buffered']
    #allocation3 [shape = 's32[1]{0}', space=sflag, size = 0x4, scoped, tag = 'scoped memory for tpu_custom_call.1']
    #allocation4 [shape = 'u8[16384]{0}', space=vmem, size = 0x4000, scoped, tag = 'input window, operand 1, single buffered']
    #allocation5 [shape = 's32[1]{0}', space=sflag, size = 0x4, scoped, tag = 'scoped memory for tpu_custom_call.1']
    %7 = vsyncpa [#allocation3], 0
    %8 = vsyncpa [#allocation5], 0
    // Predicated region
    $region2: #{tpu_custom_call.1} parent=1 // pred_check
      _
    $region3: #{tpu_custom_call.1} parent=1 // pred_check_branch
      %10 = sbr.rel (0) target = $region5
    $region4: #{tpu_custom_call.1} parent=1 // pred_region
      %12 = vsyncadd [#allocation3], 0
      %s13 = sshll.u32 %s0, 4
      %s14 = int_to_ptr.hbm [resolvable:$true] %s13
      %s15 = sshll.u32 [#allocation2], 4
      %s16 = int_to_ptr.vmem [resolvable:$true] %s15
      %21 = dma.hbm_to_vmem [thread:$0]  %s14, 512, %s16, [#allocation3], 128, 128, 8
    $region5: #{tpu_custom_call.1} parent=1 // pred_fallthru
      _
    // Predicated region
    $region6: #{tpu_custom_call.1} parent=1 // pred_check
      _
    $region7: #{tpu_custom_call.1} parent=1 // pred_check_branch
      %23 = sbr.rel (0) target = $region9
    $region8: #{tpu_custom_call.1} parent=1 // pred_region
      %25 = vsyncadd [#allocation5], 0
      %s26 = sshll.u32 %s1, 4
      %s27 = int_to_ptr.hbm [resolvable:$true] %s26
      %s28 = sshll.u32 [#allocation4], 4
      %s29 = int_to_ptr.vmem [resolvable:$true] %s28
      %34 = dma.hbm_to_vmem [thread:$0]  %s27, 512, %s29, [#allocation5], 128, 128, 8
    $region9: #{tpu_custom_call.1} parent=1 // pred_fallthru
      _
    // Predicated region
    $region10: #{tpu_custom_call.1} parent=1 // pred_check
      _
    $region11: #{tpu_custom_call.1} parent=1 // pred_check_branch
      %36 = sbr.rel (0) target = $region13
    $region12: #{tpu_custom_call.1} parent=1 // pred_region
      %38 = dma.done [#allocation3], 512
    $region13: #{tpu_custom_call.1} parent=1 // pred_fallthru
      _
    // Predicated region
    $region14: #{tpu_custom_call.1} parent=1 // pred_check
      _
    $region15: #{tpu_custom_call.1} parent=1 // pred_check_branch
      %40 = sbr.rel (0) target = $region17
    $region16: #{tpu_custom_call.1} parent=1 // pred_region
      %42 = dma.done [#allocation5], 512
    $region17: #{tpu_custom_call.1} parent=1 // pred_fallthru
      _
    %v43 = vld [vmem:[#allocation2] sm:$0xff]
    %v44 = vld [vmem:[#allocation2 + $0x8] sm:$0xff]
    %v45 = vld [vmem:[#allocation2 + $0x10] sm:$0xff]
    %v46 = vld [vmem:[#allocation2 + $0x18] sm:$0xff]
    %v47 = vld [vmem:[#allocation4] sm:$0xff]
    %v48 = vld [vmem:[#allocation4 + $0x8] sm:$0xff]
    %v49 = vld [vmem:[#allocation4 + $0x10] sm:$0xff]
    %v50 = vld [vmem:[#allocation4 + $0x18] sm:$0xff]
    %vm51 = vcmask 64512
    %v53 = vsel %vm51, %v43, 0
    %55 = vmatpush.msra.mxu0 0.0
    %56 = vmatpush.msra.mxu0 0.0
    %57 = vmatpush.msra.mxu0 0.0
    %58 = vmatpush.msra.mxu0 0.0
    %59 = vmatpush.msra.mxu0 0.0
    %60 = vmatpush.msra.mxu0 0.0
    %61 = vmatpush.msra.mxu0 0.0
    %62 = vmatpush.msra.mxu0 0.0
    %63 = vmatpush.msra.mxu0 0.0
    %64 = vmatpush.msra.mxu0 0.0
    %65 = vmatpush.msra.mxu0 0.0
    %66 = vmatpush.msra.mxu0 0.0
    %67 = vmatpush.msra.mxu0 0.0
    %68 = vmatpush.msra.mxu0 0.0
    %69 = vmatpush.msra.mxu0 0.0
    %70 = vmatpush.msra.mxu0 %v47
    %71 = vmatmul.f32.gmra.mxu0 %v53
    %v72 = vpop.f32.mrf.mxu0
    %v73 = vadd.f32 0.0, %v72
    %74 = vdwg.mxu0
    %v76 = vsel %vm51, %v44, 0
    %78 = vmatpush.msra.mxu0 0.0
    %79 = vmatpush.msra.mxu0 0.0
    %80 = vmatpush.msra.mxu0 0.0
    %81 = vmatpush.msra.mxu0 0.0
    %82 = vmatpush.msra.mxu0 0.0
    %83 = vmatpush.msra.mxu0 0.0
    %84 = vmatpush.msra.mxu0 0.0
    %85 = vmatpush.msra.mxu0 0.0
    %86 = vmatpush.msra.mxu0 0.0
    %87 = vmatpush.msra.mxu0 0.0
    %88 = vmatpush.msra.mxu0 0.0
    %89 = vmatpush.msra.mxu0 0.0
    %90 = vmatpush.msra.mxu0 0.0
    %91 = vmatpush.msra.mxu0 0.0
    %92 = vmatpush.msra.mxu0 0.0
    %93 = vmatpush.msra.mxu0 %v48
    %94 = vmatmul.f32.gmra.mxu0 %v76
    %v95 = vpop.f32.mrf.mxu0
    %v96 = vadd.f32 0.0, %v95
    %97 = vdwg.mxu0
    %v99 = vsel %vm51, %v45, 0
    %101 = vmatpush.msra.mxu0 0.0
    %102 = vmatpush.msra.mxu0 0.0
    %103 = vmatpush.msra.mxu0 0.0
    %104 = vmatpush.msra.mxu0 0.0
    %105 = vmatpush.msra.mxu0 0.0
    %106 = vmatpush.msra.mxu0 0.0
    %107 = vmatpush.msra.mxu0 0.0
    %108 = vmatpush.msra.mxu0 0.0
    %109 = vmatpush.msra.mxu0 0.0
    %110 = vmatpush.msra.mxu0 0.0
    %111 = vmatpush.msra.mxu0 0.0
    %112 = vmatpush.msra.mxu0 0.0
    %113 = vmatpush.msra.mxu0 0.0
    %114 = vmatpush.msra.mxu0 0.0
    %115 = vmatpush.msra.mxu0 0.0
    %116 = vmatpush.msra.mxu0 %v49
    %117 = vmatmul.f32.gmra.mxu0 %v99
    %v118 = vpop.f32.mrf.mxu0
    %v119 = vadd.f32 0.0, %v118
    %120 = vdwg.mxu0
    %v122 = vsel %vm51, %v46, 0
    %124 = vmatpush.msra.mxu0 0.0
    %125 = vmatpush.msra.mxu0 0.0
    %126 = vmatpush.msra.mxu0 0.0
    %127 = vmatpush.msra.mxu0 0.0
    %128 = vmatpush.msra.mxu0 0.0
    %129 = vmatpush.msra.mxu0 0.0
    %130 = vmatpush.msra.mxu0 0.0
    %131 = vmatpush.msra.mxu0 0.0
    %132 = vmatpush.msra.mxu0 0.0
    %133 = vmatpush.msra.mxu0 0.0
    %134 = vmatpush.msra.mxu0 0.0
    %135 = vmatpush.msra.mxu0 0.0
    %136 = vmatpush.msra.mxu0 0.0
    %137 = vmatpush.msra.mxu0 0.0
    %138 = vmatpush.msra.mxu0 0.0
    %139 = vmatpush.msra.mxu0 %v50
    %140 = vmatmul.f32.gmra.mxu0 %v122
    %v141 = vpop.f32.mrf.mxu0
    %v142 = vadd.f32 0.0, %v141
    %143 = vdwg.mxu0
    %v145 = vsel %vm51, %v47, 0
    %147 = vmatpush.msra.mxu0 0.0
    %148 = vmatpush.msra.mxu0 0.0
    %149 = vmatpush.msra.mxu0 0.0
    %150 = vmatpush.msra.mxu0 0.0
    %151 = vmatpush.msra.mxu0 0.0
    %152 = vmatpush.msra.mxu0 0.0
    %153 = vmatpush.msra.mxu0 0.0
    %154 = vmatpush.msra.mxu0 0.0
    %155 = vmatpush.msra.mxu0 0.0
    %156 = vmatpush.msra.mxu0 0.0
    %157 = vmatpush.msra.mxu0 0.0
    %158 = vmatpush.msra.mxu0 0.0
    %159 = vmatpush.msra.mxu0 0.0
    %160 = vmatpush.msra.mxu0 0.0
    %161 = vmatpush.msra.mxu0 0.0
    %162 = vmatpush.msra.mxu0 %v43
    %163 = vmatmul.f32.gmra.mxu0 %v145
    %v164 = vpop.f32.mrf.mxu0
    %v165 = vadd.f32 0.0, %v164
    %166 = vdwg.mxu0
    %v168 = vsel %vm51, %v48, 0
    %170 = vmatpush.msra.mxu0 0.0
    %171 = vmatpush.msra.mxu0 0.0
    %172 = vmatpush.msra.mxu0 0.0
    %173 = vmatpush.msra.mxu0 0.0
    %174 = vmatpush.msra.mxu0 0.0
    %175 = vmatpush.msra.mxu0 0.0
    %176 = vmatpush.msra.mxu0 0.0
    %177 = vmatpush.msra.mxu0 0.0
    %178 = vmatpush.msra.mxu0 0.0
    %179 = vmatpush.msra.mxu0 0.0
    %180 = vmatpush.msra.mxu0 0.0
    %181 = vmatpush.msra.mxu0 0.0
    %182 = vmatpush.msra.mxu0 0.0
    %183 = vmatpush.msra.mxu0 0.0
    %184 = vmatpush.msra.mxu0 0.0
    %185 = vmatpush.msra.mxu0 %v44
    %186 = vmatmul.f32.gmra.mxu0 %v168
    %v187 = vpop.f32.mrf.mxu0
    %v188 = vadd.f32 0.0, %v187
    %189 = vdwg.mxu0
    %v191 = vsel %vm51, %v49, 0
    %193 = vmatpush.msra.mxu0 0.0
    %194 = vmatpush.msra.mxu0 0.0
    %195 = vmatpush.msra.mxu0 0.0
    %196 = vmatpush.msra.mxu0 0.0
    %197 = vmatpush.msra.mxu0 0.0
    %198 = vmatpush.msra.mxu0 0.0
    %199 = vmatpush.msra.mxu0 0.0
    %200 = vmatpush.msra.mxu0 0.0
    %201 = vmatpush.msra.mxu0 0.0
    %202 = vmatpush.msra.mxu0 0.0
    %203 = vmatpush.msra.mxu0 0.0
    %204 = vmatpush.msra.mxu0 0.0
    %205 = vmatpush.msra.mxu0 0.0
    %206 = vmatpush.msra.mxu0 0.0
    %207 = vmatpush.msra.mxu0 0.0
    %208 = vmatpush.msra.mxu0 %v45
    %209 = vmatmul.f32.gmra.mxu0 %v191
    %v210 = vpop.f32.mrf.mxu0
    %v211 = vadd.f32 0.0, %v210
    %212 = vdwg.mxu0
    %v214 = vsel %vm51, %v50, 0
    %216 = vmatpush.msra.mxu0 0.0
    %217 = vmatpush.msra.mxu0 0.0
    %218 = vmatpush.msra.mxu0 0.0
    %219 = vmatpush.msra.mxu0 0.0
    %220 = vmatpush.msra.mxu0 0.0
    %221 = vmatpush.msra.mxu0 0.0
    %222 = vmatpush.msra.mxu0 0.0
    %223 = vmatpush.msra.mxu0 0.0
    %224 = vmatpush.msra.mxu0 0.0
    %225 = vmatpush.msra.mxu0 0.0
    %226 = vmatpush.msra.mxu0 0.0
    %227 = vmatpush.msra.mxu0 0.0
    %228 = vmatpush.msra.mxu0 0.0
    %229 = vmatpush.msra.mxu0 0.0
    %230 = vmatpush.msra.mxu0 0.0
    %231 = vmatpush.msra.mxu0 %v46
    %232 = vmatmul.f32.gmra.mxu0 %v214
    %v233 = vpop.f32.mrf.mxu0
    %v234 = vadd.f32 0.0, %v233
    %235 = vdwg.mxu0
    %236 = vst.msk [vmem:[%s2] sm:$0xff] %vm51, %v73
    %237 = vst.msk [vmem:[%s2 + $0x20] sm:$0xff] %vm51, %v96
    %238 = vst.msk [vmem:[%s2 + $0x40] sm:$0xff] %vm51, %v119
    %239 = vst.msk [vmem:[%s2 + $0x60] sm:$0xff] %vm51, %v142
    %240 = vst.msk [vmem:[%s2 + $0x8] sm:$0xff] %vm51, %v165
    %241 = vst.msk [vmem:[%s2 + $0x28] sm:$0xff] %vm51, %v188
    %242 = vst.msk [vmem:[%s2 + $0x48] sm:$0xff] %vm51, %v211
    %243 = vst.msk [vmem:[%s2 + $0x68] sm:$0xff] %vm51, %v234
    %244 = vst.msk [vmem:[%s2 + $0x10] sm:$0xff] %vm51, %v73
    %245 = vst.msk [vmem:[%s2 + $0x30] sm:$0xff] %vm51, %v96
    %246 = vst.msk [vmem:[%s2 + $0x50] sm:$0xff] %vm51, %v119
    %247 = vst.msk [vmem:[%s2 + $0x70] sm:$0xff] %vm51, %v142
    %248 = vst.msk [vmem:[%s2 + $0x18] sm:$0xff] %vm51, %v73
    %249 = vst.msk [vmem:[%s2 + $0x38] sm:$0xff] %vm51, %v96
    %250 = vst.msk [vmem:[%s2 + $0x58] sm:$0xff] %vm51, %v119
    %251 = vst.msk [vmem:[%s2 + $0x78] sm:$0xff] %vm51, %v142
    // Predicated region
    $region18: #{tpu_custom_call.1} parent=1 // pred_check
      _
    $region19: #{tpu_custom_call.1} parent=1 // pred_check_branch
      %253 = sbr.rel (0) target = $region21
    $region20: #{tpu_custom_call.1} parent=1 // pred_region
      _
    $region21: #{tpu_custom_call.1} parent=1 // pred_fallthru
      _
    // Predicated region
    $region22: #{tpu_custom_call.1} parent=1 // pred_check
      _
    $region23: #{tpu_custom_call.1} parent=1 // pred_check_branch
      %255 = sbr.rel (0) target = $region25
    $region24: #{tpu_custom_call.1} parent=1 // pred_region
      _
    $region25: #{tpu_custom_call.1} parent=1 // pred_fallthru
      _
    %256 = vsyncpa [#allocation3], 1
    %257 = vsyncpa [#allocation5], 1

</llo_original>
